<compile_context>
chip_gen: v5e
topology: v5e:2x2
jax: 0.10.0
libtpu: 0.0.40
codegen_flags: <defaults>
</compile_context>

<pallas_src>
import functools

import jax
import jax.numpy as jnp
from jax.experimental import pallas as pl
from jax.experimental.pallas import tpu as pltpu

_LANE = 128


def _cdiv(a, b):
    return -(-a // b)


def _vmem_capacity_bytes():
    cap = 64 * 1024 * 1024  # conservative default (v7x per-TC VMEM)
    try:
        info = pltpu.get_tpu_info()
        cap = int(getattr(info, "vmem_capacity_bytes", cap)) or cap
    except Exception:
        pass
    return cap


def _choose_th(h_out, max_rows):
    """Output rows per H tile: biggest value <= budget, preferring divisors
    of h_out (no padding) as long as they are at least half the budget."""
    t = max(1, min(h_out, max_rows))
    for cand in range(t, 0, -1):
        if h_out % cand == 0 and 2 * cand > t:
            return cand
    return t


def _maxpool_kernel_dense(x_ref, o_ref, *, taps):
    # x_ref: (th, K*K, w_out, L) -- window taps pre-arranged on a leading dim.
    # o_ref: (th, w_out, L)
    out = x_ref[:, 0, :, :]
    for t in range(1, taps):
        out = jnp.maximum(out, x_ref[:, t, :, :])
    o_ref[...] = out  # one lane-dense store


def _maxpool_kernel_halo(x_ref, o_ref, *, kernel_size, stride, th, w_out):
    # x_ref: (in_h, W, L) haloed block; o_ref: (th, w_out, L)
    if kernel_size <= 3:
        # Direct K*K doubly-strided loads; each input element read once
        # (for non-gapped strides), no intermediate.
        out = None
        for di in range(kernel_size):
            for dj in range(kernel_size):
                sl = x_ref[pl.ds(di, th, stride=stride),
                           pl.ds(dj, w_out, stride=stride), :]
                out = sl if out is None else jnp.maximum(out, sl)
    else:
        # Separable two-pass for large K (2K folds instead of K^2).
        wmax = None
        for dj in range(kernel_size):
            sl = x_ref[:, pl.ds(dj, w_out, stride=stride), :]
            wmax = sl if wmax is None else jnp.maximum(wmax, sl)
        h_span = (th - 1) * stride + 1
        out = None
        for di in range(kernel_size):
            sl = wmax[di:di + h_span:stride]
            out = sl if out is None else jnp.maximum(out, sl)
    o_ref[...] = out


@functools.partial(jax.jit, static_argnums=(1, 2))
def maxpool2d_pallas(x, kernel_size: int, stride: int):
    """x: (B, C, H, W) -> (B, C, H_out, W_out), same dtype as x."""
    b, c, h, w = x.shape
    k, s = kernel_size, stride
    h_out = (h - k) // s + 1
    w_out = (w - k) // s + 1
    bc = b * c
    bc_pad = _cdiv(bc, _LANE) * _LANE
    itemsize = jnp.dtype(x.dtype).itemsize

    cap = _vmem_capacity_bytes()
    vmem_limit = (cap * 3) // 4          # 48 MiB on v7x, 96 MiB on v5e/v6e
    target_in_bytes = cap // 8           # input block budget (double-buffered)

    # Widen the lane block when the fused B*C axis allows it (bigger DMA
    # segments), otherwise stick to 128.
    lane_block = _LANE
    for cand in (512, 256):
        if bc_pad % cand == 0:
            lane_block = cand
            break
    n_lane = bc_pad // lane_block

    if k == s:
        # ---- Non-overlapping windows: tap-major layout, contiguous loads ----
        bytes_per_out_row = k * k * w_out * lane_block * itemsize
        th = _choose_th(h_out, max(1, target_in_bytes // bytes_per_out_row))
        n_ht = _cdiv(h_out, th)
        if n_lane * n_ht < 2 and h_out >= 2:       # feed both v7x TensorCores
            th = _cdiv(h_out, 2)
            n_ht = _cdiv(h_out, th)
        h_out_pad = n_ht * th

        # (B,C,H,W) -> (H_out, K*K, W_out, B*C); fuses into one copy under jit.
        xt = x[:, :, : h_out * k, : w_out * k]
        xt = xt.reshape(b, c, h_out, k, w_out, k)
        xt = jnp.transpose(xt, (2, 3, 5, 4, 0, 1))     # (h_out, kh, kw, w_out, b, c)
        xt = xt.reshape(h_out, k * k, w_out, bc)
        if h_out_pad != h_out or bc_pad != bc:
            xt = jnp.pad(xt, ((0, h_out_pad - h_out), (0, 0), (0, 0),
                              (0, bc_pad - bc)))

        kernel = functools.partial(_maxpool_kernel_dense, taps=k * k)
        in_spec = pl.BlockSpec((th, k * k, w_out, lane_block),
                               lambda ci, hi: (hi, 0, 0, ci))
    else:
        # ---- Overlapping / gapped windows: haloed H tiles (element offsets) ----
        max_in_rows = max(k, target_in_bytes // (w * lane_block * itemsize))
        th = _choose_th(h_out, max(1, (max_in_rows - k) // s + 1))
        n_ht = _cdiv(h_out, th)
        if n_lane * n_ht < 2 and h_out >= 2:
            th = _cdiv(h_out, 2)
            n_ht = _cdiv(h_out, th)
        h_out_pad = n_ht * th
        in_h = (th - 1) * s + k                       # halo'd block height
        h_needed = (h_out_pad - 1) * s + k            # rows every tile can touch

        xt = jnp.transpose(x, (2, 3, 0, 1)).reshape(h, w, bc)
        xt = xt[: min(h, h_needed)]
        if h_needed > h or bc_pad != bc:
            xt = jnp.pad(xt, ((0, max(0, h_needed - h)), (0, 0),
                              (0, bc_pad - bc)))

        kernel = functools.partial(_maxpool_kernel_halo, kernel_size=k,
                                   stride=s, th=th, w_out=w_out)
        # Element-indexed H dim: index_map returns the element offset of the
        # tile's first input row (halo overlap is not expressible as Blocked).
        in_spec = pl.BlockSpec((pl.Element(in_h), w, lane_block),
                               lambda ci, hi: (hi * th * s, 0, ci))

    out = pl.pallas_call(
        kernel,
        out_shape=jax.ShapeDtypeStruct((h_out_pad, w_out, bc_pad), x.dtype),
        grid_spec=pltpu.PrefetchScalarGridSpec(
            num_scalar_prefetch=0,
            grid=(n_lane, n_ht),
            in_specs=[in_spec],
            out_specs=pl.BlockSpec((th, w_out, lane_block),
                                   lambda ci, hi: (hi, 0, ci)),
        ),
        compiler_params=pltpu.CompilerParams(
            dimension_semantics=("parallel", "parallel"),
            vmem_limit_bytes=int(vmem_limit),
        ),
    )(xt)

    # Drop H / lane padding, (H_out, W_out, B*C) -> NCHW (fused under jit).
    out = out[:h_out, :, :bc].reshape(h_out, w_out, b, c)
    return jnp.transpose(out, (2, 3, 0, 1))


def _maxpool2d_ref(x, kernel_size: int, stride: int):
    # Pure-JAX reference matching the PyTorch module's intended semantics.
    b, c, h, w = x.shape
    h_out = (h - kernel_size) // stride + 1
    w_out = (w - kernel_size) // stride + 1
    rows = []
    for i in range(h_out):
        cols = []
        for j in range(w_out):
            win = x[:, :, i * stride:i * stride + kernel_size,
                    j * stride:j * stride + kernel_size]
            cols.append(jnp.max(win, axis=(2, 3)))
        rows.append(jnp.stack(cols, axis=-1))
    return jnp.stack(rows, axis=-2)


if __name__ == "__main__":
    # Module hyperparameters (deterministic, in-script).
    KERNEL_SIZE = 2
    STRIDE = 2

    key = jax.random.PRNGKey(0)
    x = jax.random.normal(key, (2, 4, 16, 16), dtype=jnp.float32)

    out = maxpool2d_pallas(x, KERNEL_SIZE, STRIDE)
    out = jax.block_until_ready(out)

    ref = _maxpool2d_ref(x, KERNEL_SIZE, STRIDE)
    assert out.shape == (2, 4, 8, 8), out.shape
    assert out.dtype == x.dtype, out.dtype
    assert jnp.allclose(out, ref), "mismatch vs reference"

    print("KERNEL_OK")
</pallas_src>

<mosaic_0001>
module attributes {stable_mosaic.version = 11 : i64} {
  func.func @_maxpool_kernel_dense(%arg0: i32, %arg1: i32, %arg2: memref<4x4x8x128xf32, #tpu.memory_space<vmem>>, %arg3: memref<4x8x128xf32, #tpu.memory_space<vmem>>) attributes {dimension_semantics = [#tpu.dimension_semantics<parallel>, #tpu.dimension_semantics<parallel>], iteration_bounds = array<i64: 1, 2>, scalar_prefetch = 0 : i64, scratch_operands = 0 : i64, tpu.core_type = #tpu.core_type<tc>, window_params = [{transform_indices = @transform_0, window_bounds = array<i64: 4, 4, 8, 128>}, {transform_indices = @transform_1, window_bounds = array<i64: 4, 8, 128>}]} {
    %c0 = arith.constant 0 : index
    %c0_0 = arith.constant 0 : index
    %c0_1 = arith.constant 0 : index
    %c0_2 = arith.constant 0 : index
    %0 = vector.load %arg2[%c0, %c0_0, %c0_1, %c0_2] : memref<4x4x8x128xf32, #tpu.memory_space<vmem>>, vector<4x1x8x128xf32>
    %1 = vector.shape_cast %0 : vector<4x1x8x128xf32> to vector<4x8x128xf32>
    %c0_3 = arith.constant 0 : index
    %c1 = arith.constant 1 : index
    %c0_4 = arith.constant 0 : index
    %c0_5 = arith.constant 0 : index
    %2 = vector.load %arg2[%c0_3, %c1, %c0_4, %c0_5] : memref<4x4x8x128xf32, #tpu.memory_space<vmem>>, vector<4x1x8x128xf32>
    %3 = vector.shape_cast %2 : vector<4x1x8x128xf32> to vector<4x8x128xf32>
    %4 = arith.maximumf %1, %3 : vector<4x8x128xf32>
    %c0_6 = arith.constant 0 : index
    %c2 = arith.constant 2 : index
    %c0_7 = arith.constant 0 : index
    %c0_8 = arith.constant 0 : index
    %5 = vector.load %arg2[%c0_6, %c2, %c0_7, %c0_8] : memref<4x4x8x128xf32, #tpu.memory_space<vmem>>, vector<4x1x8x128xf32>
    %6 = vector.shape_cast %5 : vector<4x1x8x128xf32> to vector<4x8x128xf32>
    %7 = arith.maximumf %4, %6 : vector<4x8x128xf32>
    %c0_9 = arith.constant 0 : index
    %c3 = arith.constant 3 : index
    %c0_10 = arith.constant 0 : index
    %c0_11 = arith.constant 0 : index
    %8 = vector.load %arg2[%c0_9, %c3, %c0_10, %c0_11] : memref<4x4x8x128xf32, #tpu.memory_space<vmem>>, vector<4x1x8x128xf32>
    %9 = vector.shape_cast %8 : vector<4x1x8x128xf32> to vector<4x8x128xf32>
    %10 = arith.maximumf %7, %9 : vector<4x8x128xf32>
    %c0_12 = arith.constant 0 : index
    %c0_13 = arith.constant 0 : index
    %c0_14 = arith.constant 0 : index
    %11 = vector.load %arg3[%c0_12, %c0_13, %c0_14] : memref<4x8x128xf32, #tpu.memory_space<vmem>>, vector<4x8x128xf32>
    tpu.vector_store %arg3[%c0_12, %c0_13, %c0_14], %10 {strides = array<i32>} : memref<4x8x128xf32, #tpu.memory_space<vmem>>, vector<4x8x128xf32>,
    return
  }
  func.func @transform_0(%arg0: i32, %arg1: i32) -> (i32, i32, i32, i32) {
    %c0_i32 = arith.constant 0 : i32
    %c0_i32_0 = arith.constant 0 : i32
    %c0_i32_1 = arith.constant 0 : i32
    return %arg1, %c0_i32, %c0_i32_0, %arg0 : i32, i32, i32, i32
  }
  func.func @transform_1(%arg0: i32, %arg1: i32) -> (i32, i32, i32) {
    %c0_i32 = arith.constant 0 : i32
    %c0_i32_0 = arith.constant 0 : i32
    return %arg1, %c0_i32, %arg0 : i32, i32, i32
  }
}

</mosaic_0001>

<llo_original>
// kernel: maxpool2d_pallas.1
$region0: #{maxpool2d_pallas.1}
  #allocation0 [shape = 'u32[]', space=smem, size = 0x4, offset = 0x4, fixed_abs, tag = 'smem constant byte address 0x4 - core index']
  #allocation1 [shape = 'u32[72,128]{1,0:T(1,128)}', space=vmem, size = 0x9000, scoped, tag = 'internal scratch']
  %s0 = inlined_call_operand.vmem [shape: f32[8,4,8,128], index: 0, kind: input, shape index: {}]
  %s1 = inlined_call_operand.vmem [shape: f32[8,8,128], index: 1, kind: output, shape index: {}]
  %s2 = sld [smem:[#allocation0]]
  $region37: #{maxpool2d_pallas.1} parent=0
    _
  %s4 = ssub.s32 1, %s2
  %s5 = scalar_select 0, %s4, %s2
  loop: start=0, step=1, limit=4
  $region2: #{maxpool2d_pallas.1} parent=0 // loop_pre_header
    _
  $region3: #{maxpool2d_pallas.1} parent=0 // loop_header
    %s7 = sphi 0, %s11
    %p8 = scmp.ge.s32.totalorder %s7, 4
    %s14 = sphi 0, %s26
    %s15 = sphi 0, %s22
    %s16 = sphi 0, %s14
    %s17 = sphi 0, %s15
    %s18 = sphi 0, %s16
    %s19 = sphi 0, %s17
    %s31 = sphi 0, %s33
    %s34 = sphi 0, %s31
    %s35 = sphi 0, %s34
    %s51 = sphi 0, %s35
    %s59 = sphi 0, %s61
    %s62 = sphi 0, %s59
    %s63 = sphi 0, %s62
    %s79 = sphi 0, %s63
  $region4: #{maxpool2d_pallas.1} parent=0 // loop_header_branch
    %10 = sbr.rel (%p8) target = $region8
  $region5: #{maxpool2d_pallas.1} parent=0 // loop_body
    %s12 = ssub.s32 %s7, 1
    %s13 = ssub.s32 %s7, 2
    %s20 = sadd.s32 1, %s15
    %p21 = scmp.ge.s32.totalorder %s20, 2
    %s22 = scalar_select %p21, 0, %s20
    %s23 = sadd.s32 1, %s14
    %s24 = scalar_select %p21, %s23, %s14
    %p25 = scmp.ge.s32.totalorder %s24, 1
    %s26 = scalar_select %p25, 0, %s24
    %s27 = ssub.s32 %s15, %s22
    %s28 = ssub.s32 %s14, %s26
    %s29 = sor.u32 %s27, %s28
    %p30 = scmp.eq.s32.totalorder %s29, 0
    %s32 = sadd.s32 %s31, 1
    %s33 = scalar_select %p30, %s31, %s32
    %p36 = pneg %p30
    %p37 = scmp.eq.s32.totalorder %s7, 1
    %p38 = por %p36, %p37
    %p39 = scmp.ne.s32.totalorder %s31, %s34
    %p40 = scmp.eq.s32.totalorder %s7, 0
    %p41 = por %p39, %p40
    %p42 = scmp.ne.s32.totalorder %s31, %s34
    %p43 = scmp.eq.s32.totalorder %s12, 1
    %p44 = por %p42, %p43
    %p45 = scmp.ne.s32.totalorder %s34, %s35
    %p46 = scmp.eq.s32.totalorder %s12, 0
    %p47 = por %p45, %p46
    %p48 = scmp.ne.s32.totalorder %s34, %s35
    %p49 = scmp.eq.s32.totalorder %s13, 1
    %p50 = por %p48, %p49
    %p52 = scmp.ne.s32.totalorder %s35, %s51
    %p53 = scmp.eq.s32.totalorder %s13, 0
    %p54 = por %p52, %p53
    %s55 = ssub.s32 %s15, %s22
    %s56 = ssub.s32 %s14, %s26
    %s57 = sor.u32 %s55, %s56
    %p58 = scmp.eq.s32.totalorder %s57, 0
    %s60 = sadd.s32 %s59, 1
    %s61 = scalar_select %p58, %s59, %s60
    %p64 = pneg %p58
    %p65 = scmp.eq.s32.totalorder %s7, 1
    %p66 = por %p64, %p65
    %p67 = scmp.ne.s32.totalorder %s59, %s62
    %p68 = scmp.eq.s32.totalorder %s7, 0
    %p69 = por %p67, %p68
    %p70 = scmp.ne.s32.totalorder %s59, %s62
    %p71 = scmp.eq.s32.totalorder %s12, 1
    %p72 = por %p70, %p71
    %p73 = scmp.ne.s32.totalorder %s62, %s63
    %p74 = scmp.eq.s32.totalorder %s12, 0
    %p75 = por %p73, %p74
    %p76 = scmp.ne.s32.totalorder %s62, %s63
    %p77 = scmp.eq.s32.totalorder %s13, 1
    %p78 = por %p76, %p77
    %p80 = scmp.ne.s32.totalorder %s63, %s79
    %p81 = scmp.eq.s32.totalorder %s13, 0
    %p82 = por %p80, %p81
    %p83 = scmp.le.s32.totalorder 1, %s7
    %p84 = scmp.lt.s32.totalorder %s7, 3
    %p85 = pnand %p83, %p84
    %p86 = pneg %p85
    // Predicated region
    $region9: #{maxpool2d_pallas.1} parent=5 // pred_check
      _
    $region10: #{maxpool2d_pallas.1} parent=5 // pred_check_branch
      %88 = sbr.rel (%p85) target = $region12
    $region11: #{maxpool2d_pallas.1} parent=5 // pred_region
      %s89 = ssub.s32 %s7, 1
    $region12: #{maxpool2d_pallas.1} parent=5 // pred_fallthru
      _
    %p90 = scmp.lt.s32.totalorder %s7, 2
    // Predicated region
    $region13: #{maxpool2d_pallas.1} parent=5 // pred_check
      %p91 = pneg %p90
    $region14: #{maxpool2d_pallas.1} parent=5 // pred_check_branch
      %93 = sbr.rel (%p91) target = $region16
    $region15: #{maxpool2d_pallas.1} parent=5 // pred_region
      // Predicated region
      $region17: #{maxpool2d_pallas.1} parent=15 // pred_check
        %p94 = pneg %p41
      $region18: #{maxpool2d_pallas.1} parent=15 // pred_check_branch
        %96 = sbr.rel (%p94) target = $region20
      $region19: #{maxpool2d_pallas.1} parent=15 // pred_region
        %s97 = smul.u32 4, %s15
        %p98 = scmp.lt.s32.totalorder %s97, 7
        %s99 = scalar_select %p98, %s97, 7
        %p100 = scmp.lt.s32.totalorder %s14, 0
        %s101 = scalar_select %p100, %s14, 0
        %s102 = smul.addr %s99, 4
        %s103 = sadd.s32 %s101, %s102
        %s104 = smul.addr %s103, 8
        %s105 = scalar_lea.vmem %s0, %s104
        %s106 = smul.u32 4, %s15
      $region20: #{maxpool2d_pallas.1} parent=15 // pred_fallthru
        _
    $region16: #{maxpool2d_pallas.1} parent=5 // pred_fallthru
      _
    %p107 = scmp.le.s32.totalorder 1, %s7
    %p108 = scmp.lt.s32.totalorder %s7, 3
    %p109 = pnand %p107, %p108
    %p110 = pneg %p109
    // Predicated region
    $region21: #{maxpool2d_pallas.1} parent=5 // pred_check
      _
    $region22: #{maxpool2d_pallas.1} parent=5 // pred_check_branch
      %112 = sbr.rel (%p109) target = $region24
    $region23: #{maxpool2d_pallas.1} parent=5 // pred_region
      %s113 = ssub.s32 %s7, 1
      %s114 = smul.u32 4, %s17
      %p115 = scmp.lt.s32.totalorder %s114, 7
      %s116 = scalar_select %p115, %s114, 7
      %p117 = scmp.lt.s32.totalorder %s16, 0
      %s118 = scalar_select %p117, %s16, 0
      %s119 = smul.addr %s116, 4
      %s120 = sadd.s32 %s118, %s119
      %s121 = smul.addr %s120, 8
      %s122 = scalar_lea.vmem %s0, %s121
      %p123 = pneg %p47
      %p124 = pneg %p44
      %p125 = pneg %p75
      %p126 = pneg %p72
      %s127 = smul.u32 4, %s17
      %p128 = scmp.lt.s32.totalorder %s127, 7
      %s129 = scalar_select %p128, %s127, 7
      %p130 = scmp.lt.s32.totalorder %s16, 0
      %s131 = scalar_select %p130, %s16, 0
      %s132 = sadd.s32 %s131, %s129
      %s133 = smul.addr %s132, 8
      %s134 = scalar_lea.vmem %s1, %s133
      %s135 = smul.u32 4, %s17
      %p136 = scmp.lt.s32.totalorder %s135, 7
      %s137 = scalar_select %p136, %s135, 7
      %p138 = scmp.lt.s32.totalorder %s16, 0
      %s139 = scalar_select %p138, %s16, 0
      %s140 = smul.addr %s137, 4
      %s141 = sadd.s32 %s139, %s140
      %s142 = smul.addr %s141, 8
      %s143 = scalar_lea.vmem %s0, %s142
      %s144 = smul.u32 4, %s17
      %s145 = smul.u32 4, %s17
      %p146 = scmp.lt.s32.totalorder %s145, 7
      %s147 = scalar_select %p146, %s145, 7
      %p148 = scmp.lt.s32.totalorder %s16, 0
      %s149 = scalar_select %p148, %s16, 0
      %s150 = sadd.s32 %s149, %s147
      %s151 = smul.addr %s150, 8
      %s152 = scalar_lea.vmem %s1, %s151
      %s153 = smul.u32 4, %s17
      %v154 = vld [vmem:[%s143] sm:$0xff]
      %v155 = vld [vmem:[%s143 + $0x20] sm:$0xff]
      %v156 = vld [vmem:[%s143 + $0x40] sm:$0xff]
      %v157 = vld [vmem:[%s143 + $0x60] sm:$0xff]
      %s158 = scalar_lea.vmem %s143, 8
      %v159 = vld [vmem:[%s158] sm:$0xff]
      %v160 = vld [vmem:[%s158 + $0x20] sm:$0xff]
      %v161 = vld [vmem:[%s158 + $0x40] sm:$0xff]
      %v162 = vld [vmem:[%s158 + $0x60] sm:$0xff]
      %v163 = vmax.f32 %v154, %v159
      %v164 = vmax.f32 %v155, %v160
      %v165 = vmax.f32 %v156, %v161
      %v166 = vmax.f32 %v157, %v162
      %s167 = scalar_lea.vmem %s143, 16
      %v168 = vld [vmem:[%s167] sm:$0xff]
      %v169 = vld [vmem:[%s167 + $0x20] sm:$0xff]
      %v170 = vld [vmem:[%s167 + $0x40] sm:$0xff]
      %v171 = vld [vmem:[%s167 + $0x60] sm:$0xff]
      %v172 = vmax.f32 %v163, %v168
      %v173 = vmax.f32 %v164, %v169
      %v174 = vmax.f32 %v165, %v170
      %v175 = vmax.f32 %v166, %v171
      %s176 = scalar_lea.vmem %s143, 24
      %v177 = vld [vmem:[%s176] sm:$0xff]
      %v178 = vld [vmem:[%s176 + $0x20] sm:$0xff]
      %v179 = vld [vmem:[%s176 + $0x40] sm:$0xff]
      %v180 = vld [vmem:[%s176 + $0x60] sm:$0xff]
      %v181 = vmax.f32 %v172, %v177
      %v182 = vmax.f32 %v173, %v178
      %v183 = vmax.f32 %v174, %v179
      %v184 = vmax.f32 %v175, %v180
      %185 = vst [vmem:[%s152] sm:$0xff] %v181
      %186 = vst [vmem:[%s152 + $0x8] sm:$0xff] %v182
      %187 = vst [vmem:[%s152 + $0x10] sm:$0xff] %v183
      %188 = vst [vmem:[%s152 + $0x18] sm:$0xff] %v184
      %s189 = smul.u32 4, %s17
      %p190 = scmp.lt.s32.totalorder %s189, 7
      %s191 = scalar_select %p190, %s189, 7
      %p192 = scmp.lt.s32.totalorder %s16, 0
      %s193 = scalar_select %p192, %s16, 0
      %s194 = sadd.s32 %s193, %s191
      %s195 = smul.addr %s194, 8
      %s196 = scalar_lea.vmem %s1, %s195
      // Predicated region
      $region25: #{maxpool2d_pallas.1} parent=23 // pred_check
        %p197 = pneg %p72
      $region26: #{maxpool2d_pallas.1} parent=23 // pred_check_branch
        %199 = sbr.rel (%p197) target = $region28
      $region27: #{maxpool2d_pallas.1} parent=23 // pred_region
        %s200 = smul.u32 4, %s17
      $region28: #{maxpool2d_pallas.1} parent=23 // pred_fallthru
        _
    $region24: #{maxpool2d_pallas.1} parent=5 // pred_fallthru
      _
    %p201 = scmp.le.s32.totalorder 2, %s7
    // Predicated region
    $region29: #{maxpool2d_pallas.1} parent=5 // pred_check
      %p202 = pneg %p201
    $region30: #{maxpool2d_pallas.1} parent=5 // pred_check_branch
      %204 = sbr.rel (%p202) target = $region32
    $region31: #{maxpool2d_pallas.1} parent=5 // pred_region
      %s205 = ssub.s32 %s7, 2
      // Predicated region
      $region33: #{maxpool2d_pallas.1} parent=31 // pred_check
        %p206 = pneg %p78
      $region34: #{maxpool2d_pallas.1} parent=31 // pred_check_branch
        %208 = sbr.rel (%p206) target = $region36
      $region35: #{maxpool2d_pallas.1} parent=31 // pred_region
        %s209 = smul.u32 4, %s19
        %p210 = scmp.lt.s32.totalorder %s209, 7
        %s211 = scalar_select %p210, %s209, 7
        %p212 = scmp.lt.s32.totalorder %s18, 0
        %s213 = scalar_select %p212, %s18, 0
        %s214 = sadd.s32 %s213, %s211
        %s215 = smul.addr %s214, 8
        %s216 = scalar_lea.vmem %s1, %s215
      $region36: #{maxpool2d_pallas.1} parent=31 // pred_fallthru
        _
    $region32: #{maxpool2d_pallas.1} parent=5 // pred_fallthru
      _
  $region6: #{maxpool2d_pallas.1} parent=0 // loop_footer
    %s11 = sadd.s32 1, %s7
  $region7: #{maxpool2d_pallas.1} parent=0 // loop_footer_branch
    %6 = sbr.rel target = $region3
  $region8: #{maxpool2d_pallas.1} parent=0 // loop_exit
    _

</llo_original>
